<compile_context>
chip_gen: v7x
topology: tpu7x:2x2x1
jax: 0.10.0
libtpu: 0.0.40
codegen_flags: <defaults>
</compile_context>

<pallas_src>
import jax
import jax.numpy as jnp
from jax import lax
from jax.experimental import pallas as pl
from jax.experimental.pallas import tpu as pltpu

_EPS = 1e-6
_LANES = 128
_MAX_TILE_ROWS = 1024   # 512 KiB/tile f32: 3 inputs double-buffered + 2 accs ~ 4 MiB VMEM
_NCORES = 2             # v7x megacore split; extra pass is fully masked on 1-TC chips


def _cdiv(a, b):
    return (a + b - 1) // b


def masked_mse_loss(y_pred, y, msk):
    assert y_pred.shape == y.shape == msk.shape
    n = int(y_pred.size)

    def _flat2d(a):
        a = a.reshape(-1)                      # free (metadata-only) reshape
        rem = n % _LANES
        if rem:
            # Rare ragged case: pad only the last <128 elements with zeros
            # (zeros contribute 0 to both numerator and denominator).
            a = jnp.pad(a, (0, _LANES - rem))
        return a.reshape(-1, _LANES)

    yp2, y2, m2 = _flat2d(y_pred), _flat2d(y), _flat2d(msk)
    rows = yp2.shape[0]

    tile_rows = min(_MAX_TILE_ROWS, rows)      # full-dim block when small
    n_tiles = _cdiv(rows, tile_rows)
    steps = _cdiv(n_tiles, _NCORES)            # row-tiles handled per core

    def in_map(c, s):
        # Clamp over-coverage from the 2-core split; clamped duplicate tiles
        # are fully masked out inside the kernel.
        b = jnp.minimum(c * steps + s, n_tiles - 1)
        return (b, 0)

    def out_map(c, s):
        return (c, 0, 0)

    def kernel(yp_ref, y_ref, m_ref, num_ref, den_ref, acc_n, acc_d):
        c = pl.program_id(0)
        s = pl.program_id(1)

        @pl.when(s == 0)
        def _init():
            acc_n[...] = jnp.zeros_like(acc_n)
            acc_d[...] = jnp.zeros_like(acc_d)

        # Mask rows outside the real data (ragged last tile + clamped
        # duplicate tiles). jnp.where avoids NaN poisoning from garbage rows.
        start_row = (c * steps + s) * tile_rows
        row_ids = start_row + lax.broadcasted_iota(
            jnp.int32, (tile_rows, _LANES), 0)
        valid = row_ids < rows

        yp = yp_ref[...].astype(jnp.float32)
        yt = y_ref[...].astype(jnp.float32)
        m = m_ref[...].astype(jnp.float32)
        diff = yp - yt

        acc_n[...] += jnp.where(valid, diff * diff * m, 0.0)
        acc_d[...] += jnp.where(valid, m, 0.0)

        @pl.when(s == pl.num_programs(1) - 1)
        def _finalize():
            num_ref[0] = jnp.broadcast_to(jnp.sum(acc_n[...]), (8, _LANES))
            den_ref[0] = jnp.broadcast_to(jnp.sum(acc_d[...]), (8, _LANES))

    tile_spec = pl.BlockSpec((tile_rows, _LANES), in_map)
    part_spec = pl.BlockSpec((1, 8, _LANES), out_map)

    out_num, out_den = pl.pallas_call(
        kernel,
        out_shape=(
            jax.ShapeDtypeStruct((_NCORES, 8, _LANES), jnp.float32),
            jax.ShapeDtypeStruct((_NCORES, 8, _LANES), jnp.float32),
        ),
        grid_spec=pltpu.PrefetchScalarGridSpec(
            num_scalar_prefetch=0,
            grid=(_NCORES, steps),
            in_specs=[tile_spec, tile_spec, tile_spec],
            out_specs=[part_spec, part_spec],
            scratch_shapes=[
                pltpu.VMEM((tile_rows, _LANES), jnp.float32),
                pltpu.VMEM((tile_rows, _LANES), jnp.float32),
            ],
        ),
        compiler_params=pltpu.CompilerParams(
            dimension_semantics=("parallel", "arbitrary"),
        ),
    )(yp2, y2, m2)

    # Combine per-core partials (tiny host-side XLA ops).
    num = out_num[:, 0, 0].sum()
    den = out_den[:, 0, 0].sum()
    return num / (den + jnp.float32(_EPS))


def masked_mse_loss_ref(y_pred, y, msk):
    loss = (y_pred - y) ** 2 * msk
    return loss.sum() / (msk.sum() + _EPS)


if __name__ == "__main__":
    key = jax.random.PRNGKey(0)
    k1, k2, k3 = jax.random.split(key, 3)

    shape = (2, 4, 16, 16)  # NCHW, as the PyTorch module would see
    y_pred = jax.random.normal(k1, shape, dtype=jnp.float32)
    y = jax.random.normal(k2, shape, dtype=jnp.float32)
    msk = (jax.random.uniform(k3, shape) > 0.5).astype(jnp.float32)

    out = masked_mse_loss(y_pred, y, msk)
    out = jax.block_until_ready(out)

    ref = masked_mse_loss_ref(y_pred, y, msk)
    assert jnp.allclose(out, ref, rtol=1e-5, atol=1e-6), (out, ref)

    print("KERNEL_OK")
</pallas_src>

<mosaic_0001>
module attributes {stable_mosaic.version = 11 : i64} {
  func.func @kernel(%arg0: i32, %arg1: i32, %arg2: memref<16x128xf32, #tpu.memory_space<vmem>>, %arg3: memref<16x128xf32, #tpu.memory_space<vmem>>, %arg4: memref<16x128xf32, #tpu.memory_space<vmem>>, %arg5: memref<1x8x128xf32, #tpu.memory_space<vmem>>, %arg6: memref<1x8x128xf32, #tpu.memory_space<vmem>>, %arg7: memref<16x128xf32, #tpu.memory_space<vmem>>, %arg8: memref<16x128xf32, #tpu.memory_space<vmem>>) attributes {dimension_semantics = [#tpu.dimension_semantics<parallel>, #tpu.dimension_semantics<arbitrary>], iteration_bounds = array<i64: 2, 1>, scalar_prefetch = 0 : i64, scratch_operands = 2 : i64, tpu.core_type = #tpu.core_type<tc>, window_params = [{transform_indices = @transform_0, window_bounds = array<i64: 16, 128>}, {transform_indices = @transform_1, window_bounds = array<i64: 16, 128>}, {transform_indices = @transform_2, window_bounds = array<i64: 16, 128>}, {transform_indices = @transform_3, window_bounds = array<i64: 1, 8, 128>}, {transform_indices = @transform_4, window_bounds = array<i64: 1, 8, 128>}]} {
    %c0_i32 = arith.constant 0 : i32
    %0 = arith.cmpi eq, %arg1, %c0_i32 : i32
    %1 = arith.extui %0 : i1 to i32
    %c0_i32_0 = arith.constant 0 : i32
    %2 = arith.cmpi ne, %1, %c0_i32_0 : i32
    scf.if %2 {
      %cst_18 = arith.constant 0.000000e+00 : f32
      %30 = vector.broadcast %cst_18 : f32 to vector<16x128xf32>
      %c0_19 = arith.constant 0 : index
      %c0_20 = arith.constant 0 : index
      %31 = vector.load %arg7[%c0_19, %c0_20] : memref<16x128xf32, #tpu.memory_space<vmem>>, vector<16x128xf32>
      tpu.vector_store %arg7[%c0_19, %c0_20], %30 {strides = array<i32>} : memref<16x128xf32, #tpu.memory_space<vmem>>, vector<16x128xf32>,
      %cst_21 = arith.constant 0.000000e+00 : f32
      %32 = vector.broadcast %cst_21 : f32 to vector<16x128xf32>
      %c0_22 = arith.constant 0 : index
      %c0_23 = arith.constant 0 : index
      %33 = vector.load %arg8[%c0_22, %c0_23] : memref<16x128xf32, #tpu.memory_space<vmem>>, vector<16x128xf32>
      tpu.vector_store %arg8[%c0_22, %c0_23], %32 {strides = array<i32>} : memref<16x128xf32, #tpu.memory_space<vmem>>, vector<16x128xf32>,
    } else {
    }
    %c1_i32 = arith.constant 1 : i32
    %3 = arith.muli %arg0, %c1_i32 : i32
    %4 = arith.addi %3, %arg1 : i32
    %c16_i32 = arith.constant 16 : i32
    %5 = arith.muli %4, %c16_i32 : i32
    %6 = tpu.iota {dimensions = array<i32: 0>} : vector<16x128xi32>
    %7 = vector.broadcast %5 : i32 to vector<16x128xi32>
    %8 = arith.addi %7, %6 : vector<16x128xi32>
    %c16_i32_1 = arith.constant 16 : i32
    %9 = vector.broadcast %c16_i32_1 : i32 to vector<16x128xi32>
    %10 = arith.cmpi slt, %8, %9 : vector<16x128xi32>
    %c0 = arith.constant 0 : index
    %c0_2 = arith.constant 0 : index
    %11 = vector.load %arg2[%c0, %c0_2] : memref<16x128xf32, #tpu.memory_space<vmem>>, vector<16x128xf32>
    %c0_3 = arith.constant 0 : index
    %c0_4 = arith.constant 0 : index
    %12 = vector.load %arg3[%c0_3, %c0_4] : memref<16x128xf32, #tpu.memory_space<vmem>>, vector<16x128xf32>
    %c0_5 = arith.constant 0 : index
    %c0_6 = arith.constant 0 : index
    %13 = vector.load %arg4[%c0_5, %c0_6] : memref<16x128xf32, #tpu.memory_space<vmem>>, vector<16x128xf32>
    %14 = arith.subf %11, %12 : vector<16x128xf32>
    %c0_7 = arith.constant 0 : index
    %c0_8 = arith.constant 0 : index
    %15 = vector.load %arg7[%c0_7, %c0_8] : memref<16x128xf32, #tpu.memory_space<vmem>>, vector<16x128xf32>
    %16 = arith.mulf %14, %14 : vector<16x128xf32>
    %17 = arith.mulf %16, %13 : vector<16x128xf32>
    %cst = arith.constant 0.000000e+00 : f32
    %18 = vector.broadcast %cst : f32 to vector<16x128xf32>
    %19 = arith.select %10, %17, %18 : vector<16x128xi1>, vector<16x128xf32>
    %20 = arith.addf %15, %19 : vector<16x128xf32>
    %c0_9 = arith.constant 0 : index
    %c0_10 = arith.constant 0 : index
    %21 = vector.load %arg7[%c0_9, %c0_10] : memref<16x128xf32, #tpu.memory_space<vmem>>, vector<16x128xf32>
    tpu.vector_store %arg7[%c0_9, %c0_10], %20 {strides = array<i32>} : memref<16x128xf32, #tpu.memory_space<vmem>>, vector<16x128xf32>,
    %c0_11 = arith.constant 0 : index
    %c0_12 = arith.constant 0 : index
    %22 = vector.load %arg8[%c0_11, %c0_12] : memref<16x128xf32, #tpu.memory_space<vmem>>, vector<16x128xf32>
    %cst_13 = arith.constant 0.000000e+00 : f32
    %23 = vector.broadcast %cst_13 : f32 to vector<16x128xf32>
    %24 = arith.select %10, %13, %23 : vector<16x128xi1>, vector<16x128xf32>
    %25 = arith.addf %22, %24 : vector<16x128xf32>
    %c0_14 = arith.constant 0 : index
    %c0_15 = arith.constant 0 : index
    %26 = vector.load %arg8[%c0_14, %c0_15] : memref<16x128xf32, #tpu.memory_space<vmem>>, vector<16x128xf32>
    tpu.vector_store %arg8[%c0_14, %c0_15], %25 {strides = array<i32>} : memref<16x128xf32, #tpu.memory_space<vmem>>, vector<16x128xf32>,
    %c0_i32_16 = arith.constant 0 : i32
    %27 = arith.cmpi eq, %arg1, %c0_i32_16 : i32
    %28 = arith.extui %27 : i1 to i32
    %c0_i32_17 = arith.constant 0 : i32
    %29 = arith.cmpi ne, %28, %c0_i32_17 : i32
    scf.if %29 {
      %c0_18 = arith.constant 0 : index
      %c0_19 = arith.constant 0 : index
      %30 = vector.load %arg7[%c0_18, %c0_19] : memref<16x128xf32, #tpu.memory_space<vmem>>, vector<16x128xf32>
      %31 = vector.shape_cast %30 : vector<16x128xf32> to vector<1x16x128xf32>
      %cst_20 = arith.constant dense<0.000000e+00> : vector<1xf32>
      %32 = vector.multi_reduction <add>, %31, %cst_20 [1, 2] : vector<1x16x128xf32> to vector<1xf32>
      %33 = vector.shape_cast %32 : vector<1xf32> to vector<1x1x1xf32>
      %34 = vector.extract %33[0, 0, 0] : f32 from vector<1x1x1xf32>
      %35 = vector.broadcast %34 : f32 to vector<8x128xf32>
      %c0_21 = arith.constant 0 : index
      %c0_22 = arith.constant 0 : index
      %c0_23 = arith.constant 0 : index
      %36 = vector.load %arg5[%c0_21, %c0_22, %c0_23] : memref<1x8x128xf32, #tpu.memory_space<vmem>>, vector<1x8x128xf32>
      %37 = vector.shape_cast %36 : vector<1x8x128xf32> to vector<8x128xf32>
      %38 = vector.shape_cast %35 : vector<8x128xf32> to vector<1x8x128xf32>
      tpu.vector_store %arg5[%c0_21, %c0_22, %c0_23], %38 {strides = array<i32>} : memref<1x8x128xf32, #tpu.memory_space<vmem>>, vector<1x8x128xf32>,
      %c0_24 = arith.constant 0 : index
      %c0_25 = arith.constant 0 : index
      %39 = vector.load %arg8[%c0_24, %c0_25] : memref<16x128xf32, #tpu.memory_space<vmem>>, vector<16x128xf32>
      %40 = vector.shape_cast %39 : vector<16x128xf32> to vector<1x16x128xf32>
      %cst_26 = arith.constant dense<0.000000e+00> : vector<1xf32>
      %41 = vector.multi_reduction <add>, %40, %cst_26 [1, 2] : vector<1x16x128xf32> to vector<1xf32>
      %42 = vector.shape_cast %41 : vector<1xf32> to vector<1x1x1xf32>
      %43 = vector.extract %42[0, 0, 0] : f32 from vector<1x1x1xf32>
      %44 = vector.broadcast %43 : f32 to vector<8x128xf32>
      %c0_27 = arith.constant 0 : index
      %c0_28 = arith.constant 0 : index
      %c0_29 = arith.constant 0 : index
      %45 = vector.load %arg6[%c0_27, %c0_28, %c0_29] : memref<1x8x128xf32, #tpu.memory_space<vmem>>, vector<1x8x128xf32>
      %46 = vector.shape_cast %45 : vector<1x8x128xf32> to vector<8x128xf32>
      %47 = vector.shape_cast %44 : vector<8x128xf32> to vector<1x8x128xf32>
      tpu.vector_store %arg6[%c0_27, %c0_28, %c0_29], %47 {strides = array<i32>} : memref<1x8x128xf32, #tpu.memory_space<vmem>>, vector<1x8x128xf32>,
    } else {
    }
    return
  }
  func.func @transform_0(%arg0: i32, %arg1: i32) -> (i32, i32) {
    %c1_i32 = arith.constant 1 : i32
    %0 = arith.muli %arg0, %c1_i32 : i32
    %1 = arith.addi %0, %arg1 : i32
    %c0_i32 = arith.constant 0 : i32
    %2 = arith.minsi %1, %c0_i32 : i32
    %c0_i32_0 = arith.constant 0 : i32
    %c0_i32_1 = arith.constant 0 : i32
    return %2, %c0_i32_0 : i32, i32
  }
  func.func @transform_1(%arg0: i32, %arg1: i32) -> (i32, i32) {
    %c1_i32 = arith.constant 1 : i32
    %0 = arith.muli %arg0, %c1_i32 : i32
    %1 = arith.addi %0, %arg1 : i32
    %c0_i32 = arith.constant 0 : i32
    %2 = arith.minsi %1, %c0_i32 : i32
    %c0_i32_0 = arith.constant 0 : i32
    %c0_i32_1 = arith.constant 0 : i32
    return %2, %c0_i32_0 : i32, i32
  }
  func.func @transform_2(%arg0: i32, %arg1: i32) -> (i32, i32) {
    %c1_i32 = arith.constant 1 : i32
    %0 = arith.muli %arg0, %c1_i32 : i32
    %1 = arith.addi %0, %arg1 : i32
    %c0_i32 = arith.constant 0 : i32
    %2 = arith.minsi %1, %c0_i32 : i32
    %c0_i32_0 = arith.constant 0 : i32
    %c0_i32_1 = arith.constant 0 : i32
    return %2, %c0_i32_0 : i32, i32
  }
  func.func @transform_3(%arg0: i32, %arg1: i32) -> (i32, i32, i32) {
    %c0_i32 = arith.constant 0 : i32
    %c0_i32_0 = arith.constant 0 : i32
    %c0_i32_1 = arith.constant 0 : i32
    return %arg0, %c0_i32, %c0_i32_0 : i32, i32, i32
  }
  func.func @transform_4(%arg0: i32, %arg1: i32) -> (i32, i32, i32) {
    %c0_i32 = arith.constant 0 : i32
    %c0_i32_0 = arith.constant 0 : i32
    %c0_i32_1 = arith.constant 0 : i32
    return %arg0, %c0_i32, %c0_i32_0 : i32, i32, i32
  }
}

</mosaic_0001>

<llo_original>
// kernel: tpu_custom_call.1
$region0: #{tpu_custom_call.1}
  #allocation0 [shape = 'u32[]', space=smem, size = 0x4, offset = 0x4, fixed_abs, tag = 'smem constant byte address 0x4 - core index']
  #allocation1 [shape = 'u32[144,128]{1,0:T(1,128)}', space=vmem, size = 0x12000, scoped, tag = 'internal scratch']
  #allocation2 [shape = 'f32[16,128]{1,0:T(8,128)}', space=vmem, size = 0x2000, scoped, tag = 'scratch operand']
  #allocation3 [shape = 'f32[16,128]{1,0:T(8,128)}', space=vmem, size = 0x2000, scoped, tag = 'scratch operand']
  %s0 = inlined_call_operand.hbm [shape: f32[16,128], index: 0, kind: input, shape index: {}]
  %s1 = inlined_call_operand.hbm [shape: f32[16,128], index: 1, kind: input, shape index: {}]
  %s2 = inlined_call_operand.hbm [shape: f32[16,128], index: 2, kind: input, shape index: {}]
  %s3 = inlined_call_operand.hbm [shape: f32[2,8,128], index: 3, kind: output, shape index: {0}]
  %s4 = inlined_call_operand.hbm [shape: f32[2,8,128], index: 4, kind: output, shape index: {1}]
  %5 = xla_tuple %s3, %s4
  %s6 = sld [smem:[#allocation0]]
  $region73: #{tpu_custom_call.1} parent=0
    _
  %s8 = ssub.s32 1, %s6
  %s9 = scalar_select 0, %s8, %s6
  $region1: #{tpu_custom_call.1} parent=0
    #allocation4 [shape = 'u8[16384]{0}', space=vmem, size = 0x4000, scoped, tag = 'input window, operand 0']
    #allocation5 [shape = 's32[2]{0}', space=sflag, size = 0x8, scoped, tag = 'scoped memory for tpu_custom_call.1']
    #allocation6 [shape = 's32[2]{0}', space=sflag, size = 0x8, scoped, tag = 'scoped memory for tpu_custom_call.1']
    #allocation7 [shape = 'u8[16384]{0}', space=vmem, size = 0x4000, scoped, tag = 'input window, operand 1']
    #allocation8 [shape = 's32[2]{0}', space=sflag, size = 0x8, scoped, tag = 'scoped memory for tpu_custom_call.1']
    #allocation9 [shape = 'u8[16384]{0}', space=vmem, size = 0x4000, scoped, tag = 'input window, operand 2']
    #allocation10 [shape = 'u8[8192]{0}', space=vmem, size = 0x2000, scoped, tag = 'output window, operand 0']
    #allocation11 [shape = 'u8[8192]{0}', space=vmem, size = 0x2000, scoped, tag = 'output window, operand 1']
    #allocation12 [shape = 's32[2]{0}', space=sflag, size = 0x8, scoped, tag = 'scoped memory for tpu_custom_call.1']
    %10 = vsyncpa [#allocation5], 0
    %s11 = scalar_lea.sflag [#allocation5], 1
    %12 = vsyncpa %s11, 0
    %13 = vsyncpa [#allocation8], 0
    %s14 = scalar_lea.sflag [#allocation8], 1
    %15 = vsyncpa %s14, 0
    %16 = vsyncpa [#allocation6], 0
    %s17 = scalar_lea.sflag [#allocation6], 1
    %18 = vsyncpa %s17, 0
    %19 = vsyncpa [#allocation12], 0
    %s20 = scalar_lea.sflag [#allocation12], 1
    %21 = vsyncpa %s20, 0
    loop: start=0, step=1, limit=4
    $region2: #{tpu_custom_call.1} parent=1 // loop_pre_header
      _
    $region3: #{tpu_custom_call.1} parent=1 // loop_header
      %s23 = sphi 0, %s27
      %p24 = scmp.ge.s32.totalorder %s23, 4
      %s30 = sphi 0, %s42
      %s31 = sphi 0, %s38
      %s32 = sphi 0, %s30
      %s33 = sphi 0, %s31
      %s34 = sphi 0, %s32
      %s35 = sphi 0, %s33
      %s51 = sphi 0, %s53
      %s54 = sphi 0, %s51
      %s55 = sphi 0, %s54
      %s71 = sphi 0, %s55
      %s83 = sphi 0, %s85
      %s86 = sphi 0, %s83
      %s87 = sphi 0, %s86
      %s103 = sphi 0, %s87
      %s115 = sphi 0, %s117
      %s118 = sphi 0, %s115
      %s119 = sphi 0, %s118
      %s135 = sphi 0, %s119
      %s141 = sphi 0, %s143
      %s144 = sphi 0, %s141
      %s145 = sphi 0, %s144
      %s161 = sphi 0, %s145
      %s167 = sphi 0, %s169
      %s170 = sphi 0, %s167
      %s171 = sphi 0, %s170
      %s187 = sphi 0, %s171
    $region4: #{tpu_custom_call.1} parent=1 // loop_header_branch
      %26 = sbr.rel (%p24) target = $region8
    $region5: #{tpu_custom_call.1} parent=1 // loop_body
      %s28 = ssub.s32 %s23, 1
      %s29 = ssub.s32 %s23, 2
      %s36 = sadd.s32 1, %s31
      %p37 = scmp.ge.s32.totalorder %s36, 1
      %s38 = scalar_select %p37, 0, %s36
      %s39 = sadd.s32 1, %s30
      %s40 = scalar_select %p37, %s39, %s30
      %p41 = scmp.ge.s32.totalorder %s40, 2
      %s42 = scalar_select %p41, 0, %s40
      %s43 = sadd.s32 %s30, %s31
      %p44 = scmp.lt.s32.totalorder %s43, 0
      %s45 = scalar_select %p44, %s43, 0
      %s46 = sadd.s32 %s42, %s38
      %p47 = scmp.lt.s32.totalorder %s46, 0
      %s48 = scalar_select %p47, %s46, 0
      %s49 = ssub.s32 %s45, %s48
      %p50 = scmp.eq.s32.totalorder %s49, 0
      %s52 = sadd.s32 %s51, 1
      %s53 = scalar_select %p50, %s51, %s52
      %p56 = pneg %p50
      %p57 = scmp.eq.s32.totalorder %s23, 1
      %p58 = por %p56, %p57
      %p59 = scmp.ne.s32.totalorder %s51, %s54
      %p60 = scmp.eq.s32.totalorder %s23, 0
      %p61 = por %p59, %p60
      %p62 = scmp.ne.s32.totalorder %s51, %s54
      %p63 = scmp.eq.s32.totalorder %s28, 1
      %p64 = por %p62, %p63
      %p65 = scmp.ne.s32.totalorder %s54, %s55
      %p66 = scmp.eq.s32.totalorder %s28, 0
      %p67 = por %p65, %p66
      %p68 = scmp.ne.s32.totalorder %s54, %s55
      %p69 = scmp.eq.s32.totalorder %s29, 1
      %p70 = por %p68, %p69
      %p72 = scmp.ne.s32.totalorder %s55, %s71
      %p73 = scmp.eq.s32.totalorder %s29, 0
      %p74 = por %p72, %p73
      %s75 = sadd.s32 %s30, %s31
      %p76 = scmp.lt.s32.totalorder %s75, 0
      %s77 = scalar_select %p76, %s75, 0
      %s78 = sadd.s32 %s42, %s38
      %p79 = scmp.lt.s32.totalorder %s78, 0
      %s80 = scalar_select %p79, %s78, 0
      %s81 = ssub.s32 %s77, %s80
      %p82 = scmp.eq.s32.totalorder %s81, 0
      %s84 = sadd.s32 %s83, 1
      %s85 = scalar_select %p82, %s83, %s84
      %p88 = pneg %p82
      %p89 = scmp.eq.s32.totalorder %s23, 1
      %p90 = por %p88, %p89
      %p91 = scmp.ne.s32.totalorder %s83, %s86
      %p92 = scmp.eq.s32.totalorder %s23, 0
      %p93 = por %p91, %p92
      %p94 = scmp.ne.s32.totalorder %s83, %s86
      %p95 = scmp.eq.s32.totalorder %s28, 1
      %p96 = por %p94, %p95
      %p97 = scmp.ne.s32.totalorder %s86, %s87
      %p98 = scmp.eq.s32.totalorder %s28, 0
      %p99 = por %p97, %p98
      %p100 = scmp.ne.s32.totalorder %s86, %s87
      %p101 = scmp.eq.s32.totalorder %s29, 1
      %p102 = por %p100, %p101
      %p104 = scmp.ne.s32.totalorder %s87, %s103
      %p105 = scmp.eq.s32.totalorder %s29, 0
      %p106 = por %p104, %p105
      %s107 = sadd.s32 %s30, %s31
      %p108 = scmp.lt.s32.totalorder %s107, 0
      %s109 = scalar_select %p108, %s107, 0
      %s110 = sadd.s32 %s42, %s38
      %p111 = scmp.lt.s32.totalorder %s110, 0
      %s112 = scalar_select %p111, %s110, 0
      %s113 = ssub.s32 %s109, %s112
      %p114 = scmp.eq.s32.totalorder %s113, 0
      %s116 = sadd.s32 %s115, 1
      %s117 = scalar_select %p114, %s115, %s116
      %p120 = pneg %p114
      %p121 = scmp.eq.s32.totalorder %s23, 1
      %p122 = por %p120, %p121
      %p123 = scmp.ne.s32.totalorder %s115, %s118
      %p124 = scmp.eq.s32.totalorder %s23, 0
      %p125 = por %p123, %p124
      %p126 = scmp.ne.s32.totalorder %s115, %s118
      %p127 = scmp.eq.s32.totalorder %s28, 1
      %p128 = por %p126, %p127
      %p129 = scmp.ne.s32.totalorder %s118, %s119
      %p130 = scmp.eq.s32.totalorder %s28, 0
      %p131 = por %p129, %p130
      %p132 = scmp.ne.s32.totalorder %s118, %s119
      %p133 = scmp.eq.s32.totalorder %s29, 1
      %p134 = por %p132, %p133
      %p136 = scmp.ne.s32.totalorder %s119, %s135
      %p137 = scmp.eq.s32.totalorder %s29, 0
      %p138 = por %p136, %p137
      %s139 = ssub.s32 %s30, %s42
      %p140 = scmp.eq.s32.totalorder %s139, 0
      %s142 = sadd.s32 %s141, 1
      %s143 = scalar_select %p140, %s141, %s142
      %p146 = pneg %p140
      %p147 = scmp.eq.s32.totalorder %s23, 1
      %p148 = por %p146, %p147
      %p149 = scmp.ne.s32.totalorder %s141, %s144
      %p150 = scmp.eq.s32.totalorder %s23, 0
      %p151 = por %p149, %p150
      %p152 = scmp.ne.s32.totalorder %s141, %s144
      %p153 = scmp.eq.s32.totalorder %s28, 1
      %p154 = por %p152, %p153
      %p155 = scmp.ne.s32.totalorder %s144, %s145
      %p156 = scmp.eq.s32.totalorder %s28, 0
      %p157 = por %p155, %p156
      %p158 = scmp.ne.s32.totalorder %s144, %s145
      %p159 = scmp.eq.s32.totalorder %s29, 1
      %p160 = por %p158, %p159
      %p162 = scmp.ne.s32.totalorder %s145, %s161
      %p163 = scmp.eq.s32.totalorder %s29, 0
      %p164 = por %p162, %p163
      %s165 = ssub.s32 %s30, %s42
      %p166 = scmp.eq.s32.totalorder %s165, 0
      %s168 = sadd.s32 %s167, 1
      %s169 = scalar_select %p166, %s167, %s168
      %p172 = pneg %p166
      %p173 = scmp.eq.s32.totalorder %s23, 1
      %p174 = por %p172, %p173
      %p175 = scmp.ne.s32.totalorder %s167, %s170
      %p176 = scmp.eq.s32.totalorder %s23, 0
      %p177 = por %p175, %p176
      %p178 = scmp.ne.s32.totalorder %s167, %s170
      %p179 = scmp.eq.s32.totalorder %s28, 1
      %p180 = por %p178, %p179
      %p181 = scmp.ne.s32.totalorder %s170, %s171
      %p182 = scmp.eq.s32.totalorder %s28, 0
      %p183 = por %p181, %p182
      %p184 = scmp.ne.s32.totalorder %s170, %s171
      %p185 = scmp.eq.s32.totalorder %s29, 1
      %p186 = por %p184, %p185
      %p188 = scmp.ne.s32.totalorder %s171, %s187
      %p189 = scmp.eq.s32.totalorder %s29, 0
      %p190 = por %p188, %p189
      %p191 = scmp.le.s32.totalorder 1, %s23
      %p192 = scmp.lt.s32.totalorder %s23, 3
      %p193 = pnand %p191, %p192
      %p194 = pneg %p193
      // Predicated region
      $region9: #{tpu_custom_call.1} parent=5 // pred_check
        _
      $region10: #{tpu_custom_call.1} parent=5 // pred_check_branch
        %196 = sbr.rel (%p193) target = $region12
      $region11: #{tpu_custom_call.1} parent=5 // pred_region
        %s197 = ssub.s32 %s23, 1
      $region12: #{tpu_custom_call.1} parent=5 // pred_fallthru
        _
      %p198 = scmp.lt.s32.totalorder %s23, 2
      // Predicated region
      $region13: #{tpu_custom_call.1} parent=5 // pred_check
        %p199 = pneg %p198
      $region14: #{tpu_custom_call.1} parent=5 // pred_check_branch
        %201 = sbr.rel (%p199) target = $region16
      $region15: #{tpu_custom_call.1} parent=5 // pred_region
        // Predicated region
        $region17: #{tpu_custom_call.1} parent=15 // pred_check
          %p202 = pneg %p61
        $region18: #{tpu_custom_call.1} parent=15 // pred_check_branch
          %204 = sbr.rel (%p202) target = $region20
        $region19: #{tpu_custom_call.1} parent=15 // pred_region
          %s205 = sand.u32 %s51, 1
          %s206 = scalar_lea.sflag [#allocation5], %s205
          %s207 = sand.u32 %s51, 1
          %s208 = smul.addr %s207, 16
          %s209 = scalar_lea.vmem [#allocation4], %s208
          %s210 = sadd.s32 %s30, %s31
          %p211 = scmp.lt.s32.totalorder %s210, 0
          %s212 = scalar_select %p211, %s210, 0
          %s213 = smul.u32 2, %s212
          %s215 = ssub.s32 256, 256
          %216 = vsyncadd %s206, %s215
          %s217 = smul.addr %s213, 128
          %s218 = scalar_lea.hbm %s0, %s217
          %s219 = sshll.u32 %s209, 4
          %s220 = int_to_ptr.vmem [resolvable:$true] %s219
          %225 = dma.hbm_to_vmem [thread:$0]  %s218, 256, %s220, %s206, 128, 128, 8
        $region20: #{tpu_custom_call.1} parent=15 // pred_fallthru
          _
        // Predicated region
        $region21: #{tpu_custom_call.1} parent=15 // pred_check
          %p226 = pneg %p93
        $region22: #{tpu_custom_call.1} parent=15 // pred_check_branch
          %228 = sbr.rel (%p226) target = $region24
        $region23: #{tpu_custom_call.1} parent=15 // pred_region
          %s229 = sand.u32 %s23, 1
          %s230 = scalar_lea.sflag [#allocation8], %s229
          %s231 = sand.u32 %s83, 1
          %s232 = smul.addr %s231, 16
          %s233 = scalar_lea.vmem [#allocation7], %s232
          %s234 = sadd.s32 %s30, %s31
          %p235 = scmp.lt.s32.totalorder %s234, 0
          %s236 = scalar_select %p235, %s234, 0
          %s237 = smul.u32 2, %s236
          %s239 = ssub.s32 256, 256
          %240 = vsyncadd %s230, %s239
          %s241 = smul.addr %s237, 128
          %s242 = scalar_lea.hbm %s1, %s241
          %s243 = sshll.u32 %s233, 4
          %s244 = int_to_ptr.vmem [resolvable:$true] %s243
          %249 = dma.hbm_to_vmem [thread:$0]  %s242, 256, %s244, %s230, 128, 128, 8
        $region24: #{tpu_custom_call.1} parent=15 // pred_fallthru
          _
        // Predicated region
        $region25: #{tpu_custom_call.1} parent=15 // pred_check
          %p250 = pneg %p125
        $region26: #{tpu_custom_call.1} parent=15 // pred_check_branch
          %252 = sbr.rel (%p250) target = $region28
        $region27: #{tpu_custom_call.1} parent=15 // pred_region
          %s253 = sand.u32 %s23, 1
          %s254 = scalar_lea.sflag [#allocation8], %s253
          %s255 = sand.u32 %s115, 1
          %s256 = smul.addr %s255, 16
          %s257 = scalar_lea.vmem [#allocation9], %s256
          %s258 = sadd.s32 %s30, %s31
          %p259 = scmp.lt.s32.totalorder %s258, 0
          %s260 = scalar_select %p259, %s258, 0
          %s261 = smul.u32 2, %s260
          %s263 = ssub.s32 256, 256
          %264 = vsyncadd %s254, %s263
          %s265 = smul.addr %s261, 128
          %s266 = scalar_lea.hbm %s2, %s265
          %s267 = sshll.u32 %s257, 4
          %s268 = int_to_ptr.vmem [resolvable:$true] %s267
          %273 = dma.hbm_to_vmem [thread:$0]  %s266, 256, %s268, %s254, 128, 128, 8
        $region28: #{tpu_custom_call.1} parent=15 // pred_fallthru
          _
      $region16: #{tpu_custom_call.1} parent=5 // pred_fallthru
        _
      %p274 = scmp.le.s32.totalorder 1, %s23
      %p275 = scmp.lt.s32.totalorder %s23, 3
      %p276 = pnand %p274, %p275
      %p277 = pneg %p276
      // Predicated region
      $region29: #{tpu_custom_call.1} parent=5 // pred_check
        _
      $region30: #{tpu_custom_call.1} parent=5 // pred_check_branch
        %279 = sbr.rel (%p276) target = $region32
      $region31: #{tpu_custom_call.1} parent=5 // pred_region
        %s280 = ssub.s32 %s23, 1
        %s281 = sand.u32 %s54, 1
        %s282 = scalar_lea.sflag [#allocation5], %s281
        %s283 = sand.u32 %s54, 1
        %s284 = smul.addr %s283, 16
        %s285 = scalar_lea.vmem [#allocation4], %s284
        // Predicated region
        $region33: #{tpu_custom_call.1} parent=31 // pred_check
          %p286 = pneg %p67
        $region34: #{tpu_custom_call.1} parent=31 // pred_check_branch
          %288 = sbr.rel (%p286) target = $region36
        $region35: #{tpu_custom_call.1} parent=31 // pred_region
          %289 = dma.done %s282, 256
        $region36: #{tpu_custom_call.1} parent=31 // pred_fallthru
          _
        %s290 = sand.u32 %s28, 1
        %s291 = scalar_lea.sflag [#allocation8], %s290
        %s292 = sand.u32 %s86, 1
        %s293 = smul.addr %s292, 16
        %s294 = scalar_lea.vmem [#allocation7], %s293
        // Predicated region
        $region37: #{tpu_custom_call.1} parent=31 // pred_check
          %p295 = pneg %p99
        $region38: #{tpu_custom_call.1} parent=31 // pred_check_branch
          %297 = sbr.rel (%p295) target = $region40
        $region39: #{tpu_custom_call.1} parent=31 // pred_region
          %298 = dma.done %s291, 256
        $region40: #{tpu_custom_call.1} parent=31 // pred_fallthru
          _
        %s299 = sand.u32 %s28, 1
        %s300 = scalar_lea.sflag [#allocation8], %s299
        %s301 = sand.u32 %s118, 1
        %s302 = smul.addr %s301, 16
        %s303 = scalar_lea.vmem [#allocation9], %s302
        // Predicated region
        $region41: #{tpu_custom_call.1} parent=31 // pred_check
          %p304 = pneg %p131
        $region42: #{tpu_custom_call.1} parent=31 // pred_check_branch
          %306 = sbr.rel (%p304) target = $region44
        $region43: #{tpu_custom_call.1} parent=31 // pred_region
          %307 = dma.done %s300, 256
        $region44: #{tpu_custom_call.1} parent=31 // pred_fallthru
          _
        %s308 = sand.u32 %s54, 1
        %s309 = scalar_lea.sflag [#allocation5], %s308
        %s310 = sand.u32 %s54, 1
        %s311 = smul.addr %s310, 16
        %s312 = scalar_lea.vmem [#allocation4], %s311
        %p313 = pneg %p67
        %p314 = pneg %p64
        %s315 = sand.u32 %s28, 1
        %s316 = scalar_lea.sflag [#allocation8], %s315
        %s317 = sand.u32 %s86, 1
        %s318 = smul.addr %s317, 16
        %s319 = scalar_lea.vmem [#allocation7], %s318
        %p320 = pneg %p99
        %p321 = pneg %p96
        %s322 = sand.u32 %s28, 1
        %s323 = scalar_lea.sflag [#allocation8], %s322
        %s324 = sand.u32 %s118, 1
        %s325 = smul.addr %s324, 16
        %s326 = scalar_lea.vmem [#allocation9], %s325
        %p327 = pneg %p131
        %p328 = pneg %p128
        %p329 = pneg %p157
        %p330 = pneg %p154
        %s331 = sand.u32 %s144, 1
        %s332 = scalar_lea.sflag [#allocation6], %s331
        %s333 = sand.u32 %s144, 1
        %s334 = smul.addr %s333, 8
        %s335 = scalar_lea.vmem [#allocation10], %s334
        %p336 = pneg %p183
        %p337 = pneg %p180
        %s338 = sand.u32 %s170, 1
        %s339 = scalar_lea.sflag [#allocation12], %s338
        %s340 = sand.u32 %s170, 1
        %s341 = smul.addr %s340, 8
        %s342 = scalar_lea.vmem [#allocation11], %s341
        %s343 = sadd.s32 %s32, %s33
        %p344 = scmp.lt.s32.totalorder %s343, 0
        %s345 = scalar_select %p344, %s343, 0
        %s346 = smul.u32 2, %s345
        %s347 = sadd.s32 %s32, %s33
        %p348 = scmp.lt.s32.totalorder %s347, 0
        %s349 = scalar_select %p348, %s347, 0
        %s350 = smul.u32 2, %s349
        %s351 = sadd.s32 %s32, %s33
        %p352 = scmp.lt.s32.totalorder %s351, 0
        %s353 = scalar_select %p352, %s351, 0
        %s354 = smul.u32 2, %s353
        %p355 = scmp.eq.s32.totalorder %s33, 0
        // Predicated region
        $region45: #{tpu_custom_call.1} parent=31 // pred_check
          %p356 = pneg %p355
        $region46: #{tpu_custom_call.1} parent=31 // pred_check_branch
          %358 = sbr.rel (%p356) target = $region48
        $region47: #{tpu_custom_call.1} parent=31 // pred_region
          %359 = vst [vmem:[#allocation2] sm:$0xff] 0.0
          %360 = vst [vmem:[#allocation2 + $0x8] sm:$0xff] 0.0
          %361 = vst [vmem:[#allocation3] sm:$0xff] 0.0
          %362 = vst [vmem:[#allocation3 + $0x8] sm:$0xff] 0.0
        $region48: #{tpu_custom_call.1} parent=31 // pred_fallthru
          _
        %s363 = sadd.s32 %s32, %s33
        %s364 = smul.u32 %s363, 16
        %v365 = vlaneseq
        %v366 = vshrl.u32 %v365, 7
        %v367 = vadd.s32 %v366, 8
        %v368 = vstv %s364
        %v369 = vadd.s32 %v368, %v366
        %v370 = vadd.s32 %v368, %v367
        %vm371 = vcmp.lt.s32.totalorder %v369, 16
        %vm372 = vcmp.lt.s32.totalorder %v370, 16
        %v373 = vld [vmem:[%s285] sm:$0xff]
        %v374 = vld [vmem:[%s285 + $0x8] sm:$0xff]
        %v375 = vld [vmem:[%s294] sm:$0xff]
        %v376 = vld [vmem:[%s294 + $0x8] sm:$0xff]
        %v377 = vld [vmem:[%s303] sm:$0xff]
        %v378 = vld [vmem:[%s303 + $0x8] sm:$0xff]
        %v379 = vsub.f32 %v373, %v375
        %v380 = vsub.f32 %v374, %v376
        %v381 = vld [vmem:[#allocation2] sm:$0xff]
        %v382 = vld [vmem:[#allocation2 + $0x8] sm:$0xff]
        %v383 = vmul.f32 %v379, %v379
        %v384 = vmul.f32 %v380, %v380
        %v385 = vmul.f32 %v383, %v377
        %v386 = vmul.f32 %v384, %v378
        %v387 = vsel %vm371, %v385, 0.0
        %v388 = vsel %vm372, %v386, 0.0
        %v389 = vadd.f32 %v381, %v387
        %v390 = vadd.f32 %v382, %v388
        %391 = vst [vmem:[#allocation2] sm:$0xff] %v389
        %392 = vst [vmem:[#allocation2 + $0x8] sm:$0xff] %v390
        %v393 = vld [vmem:[#allocation3] sm:$0xff]
        %v394 = vld [vmem:[#allocation3 + $0x8] sm:$0xff]
        %v395 = vsel %vm371, %v377, 0.0
        %v396 = vsel %vm372, %v378, 0.0
        %v397 = vadd.f32 %v393, %v395
        %v398 = vadd.f32 %v394, %v396
        %399 = vst [vmem:[#allocation3] sm:$0xff] %v397
        %400 = vst [vmem:[#allocation3 + $0x8] sm:$0xff] %v398
        // Predicated region
        $region49: #{tpu_custom_call.1} parent=31 // pred_check
          %p401 = pneg %p355
        $region50: #{tpu_custom_call.1} parent=31 // pred_check_branch
          %403 = sbr.rel (%p401) target = $region52
        $region51: #{tpu_custom_call.1} parent=31 // pred_region
          %v404 = vld [vmem:[#allocation2] sm:$0xff]
          %v405 = vld [vmem:[#allocation2 + $0x8] sm:$0xff]
          %v406 = vadd.f32 %v404, %v405
          %407 = vadd.xlane.f32.xlu0 %v406
          %v408 = vpop.xlane.xlu0 %407
          %v409 = vrot.slane %v408, 4
          %v410 = vadd.f32 %v408, %v409
          %v411 = vrot.slane %v410, 2
          %v412 = vadd.f32 %v410, %v411
          %v413 = vrot.slane %v412, 1
          %v414 = vadd.f32 %v412, %v413
          %s415 = vtos %v414
          %v416 = vstv %s415
          %417 = vst [vmem:[%s335] sm:$0xff] %v416
          %v418 = vld [vmem:[#allocation3] sm:$0xff]
          %v419 = vld [vmem:[#allocation3 + $0x8] sm:$0xff]
          %v420 = vadd.f32 %v418, %v419
          %421 = vadd.xlane.f32.xlu0 %v420
          %v422 = vpop.xlane.xlu0 %421
          %v423 = vrot.slane %v422, 4
          %v424 = vadd.f32 %v422, %v423
          %v425 = vrot.slane %v424, 2
          %v426 = vadd.f32 %v424, %v425
          %v427 = vrot.slane %v426, 1
          %v428 = vadd.f32 %v426, %v427
          %s429 = vtos %v428
          %v430 = vstv %s429
          %431 = vst [vmem:[%s342] sm:$0xff] %v430
        $region52: #{tpu_custom_call.1} parent=31 // pred_fallthru
          _
        %s432 = sand.u32 %s144, 1
        %s433 = scalar_lea.sflag [#allocation6], %s432
        %s434 = sand.u32 %s144, 1
        %s435 = smul.addr %s434, 8
        %s436 = scalar_lea.vmem [#allocation10], %s435
        %s437 = sand.u32 %s170, 1
        %s438 = scalar_lea.sflag [#allocation12], %s437
        %s439 = sand.u32 %s170, 1
        %s440 = smul.addr %s439, 8
        %s441 = scalar_lea.vmem [#allocation11], %s440
        // Predicated region
        $region53: #{tpu_custom_call.1} parent=31 // pred_check
          %p442 = pneg %p154
        $region54: #{tpu_custom_call.1} parent=31 // pred_check_branch
          %444 = sbr.rel (%p442) target = $region56
        $region55: #{tpu_custom_call.1} parent=31 // pred_region
          %s446 = ssub.s32 128, 128
          %447 = vsyncadd %s433, %s446
          %s448 = smul.addr %s32, 128
          %s449 = scalar_lea.hbm %s3, %s448
          %s451 = sshll.u32 %s436, 4
          %s452 = int_to_ptr.vmem [resolvable:$true] %s451
          %454 = dma.vmem_to_hbm [thread:$0]  %s452, 128, %s449, %s433
        $region56: #{tpu_custom_call.1} parent=31 // pred_fallthru
          _
        // Predicated region
        $region57: #{tpu_custom_call.1} parent=31 // pred_check
          %p455 = pneg %p180
        $region58: #{tpu_custom_call.1} parent=31 // pred_check_branch
          %457 = sbr.rel (%p455) target = $region60
        $region59: #{tpu_custom_call.1} parent=31 // pred_region
          %s459 = ssub.s32 128, 128
          %460 = vsyncadd %s438, %s459
          %s461 = smul.addr %s32, 128
          %s462 = scalar_lea.hbm %s4, %s461
          %s464 = sshll.u32 %s441, 4
          %s465 = int_to_ptr.vmem [resolvable:$true] %s464
          %467 = dma.vmem_to_hbm [thread:$0]  %s465, 128, %s462, %s438
        $region60: #{tpu_custom_call.1} parent=31 // pred_fallthru
          _
      $region32: #{tpu_custom_call.1} parent=5 // pred_fallthru
        _
      %p468 = scmp.le.s32.totalorder 2, %s23
      // Predicated region
      $region61: #{tpu_custom_call.1} parent=5 // pred_check
        %p469 = pneg %p468
      $region62: #{tpu_custom_call.1} parent=5 // pred_check_branch
        %471 = sbr.rel (%p469) target = $region64
      $region63: #{tpu_custom_call.1} parent=5 // pred_region
        %s472 = ssub.s32 %s23, 2
        // Predicated region
        $region65: #{tpu_custom_call.1} parent=63 // pred_check
          %p473 = pneg %p160
        $region66: #{tpu_custom_call.1} parent=63 // pred_check_branch
          %475 = sbr.rel (%p473) target = $region68
        $region67: #{tpu_custom_call.1} parent=63 // pred_region
          %s476 = sand.u32 %s145, 1
          %s477 = scalar_lea.sflag [#allocation6], %s476
          %s478 = sand.u32 %s145, 1
          %s479 = smul.addr %s478, 8
          %s480 = scalar_lea.vmem [#allocation10], %s479
          %481 = dma.done %s477, 128
        $region68: #{tpu_custom_call.1} parent=63 // pred_fallthru
          _
        // Predicated region
        $region69: #{tpu_custom_call.1} parent=63 // pred_check
          %p482 = pneg %p186
        $region70: #{tpu_custom_call.1} parent=63 // pred_check_branch
          %484 = sbr.rel (%p482) target = $region72
        $region71: #{tpu_custom_call.1} parent=63 // pred_region
          %s485 = sand.u32 %s171, 1
          %s486 = scalar_lea.sflag [#allocation12], %s485
          %s487 = sand.u32 %s171, 1
          %s488 = smul.addr %s487, 8
          %s489 = scalar_lea.vmem [#allocation11], %s488
          %490 = dma.done %s486, 128
        $region72: #{tpu_custom_call.1} parent=63 // pred_fallthru
          _
      $region64: #{tpu_custom_call.1} parent=5 // pred_fallthru
        _
    $region6: #{tpu_custom_call.1} parent=1 // loop_footer
      %s27 = sadd.s32 1, %s23
    $region7: #{tpu_custom_call.1} parent=1 // loop_footer_branch
      %22 = sbr.rel target = $region3
    $region8: #{tpu_custom_call.1} parent=1 // loop_exit
      _
    %491 = vsyncpa [#allocation5], 1
    %s492 = scalar_lea.sflag [#allocation5], 1
    %493 = vsyncpa %s492, 1
    %494 = vsyncpa [#allocation8], 1
    %s495 = scalar_lea.sflag [#allocation8], 1
    %496 = vsyncpa %s495, 1
    %497 = vsyncpa [#allocation6], 1
    %s498 = scalar_lea.sflag [#allocation6], 1
    %499 = vsyncpa %s498, 1
    %500 = vsyncpa [#allocation12], 1
    %s501 = scalar_lea.sflag [#allocation12], 1
    %502 = vsyncpa %s501, 1

</llo_original>
